<compile_context>
chip_gen: v7x
topology: tpu7x:2x2x1
jax: 0.10.0
libtpu: 0.0.40
codegen_flags: <defaults>
</compile_context>

<pallas_src>
import jax
import jax.numpy as jnp
from jax.experimental import pallas as pl
from jax.experimental.pallas import tpu as pltpu

TINY_F32 = 1e-13  # tiny_value_of_dtype(torch.float32)


def _round_up(x, m):
    return (x + m - 1) // m * m


def _default_budgets():
    """Per-generation block / scoped-VMEM budgets (v5e/v6e: 128 MiB, v7x: 64 MiB/TC)."""
    try:
        cap = int(getattr(pltpu.get_tpu_info(), "vmem_capacity_bytes",
                          64 * 1024 * 1024))
    except Exception:  # query unavailable -> assume the smallest (v7x per-TC)
        cap = 64 * 1024 * 1024
    vmem_limit = min((cap * 3) // 4, 96 * 1024 * 1024)   # 48 MiB v7x, 96 MiB v5e/v6e
    block_bytes = max(8 * 1024 * 1024, min(vmem_limit // 3, 32 * 1024 * 1024))
    return block_bytes, vmem_limit


def _choose_tiles(B, S, D, block_bytes):
    """Pick (tb, td) so one double-buffered h block fits `block_bytes`.

    Accounts for (8,128) VMEM tiling: a (tb, S, td) f32 block occupies
    tb * ceil(S/8)*8 * ceil(td/128)*128 * 4 bytes in VMEM.
    Partial batch tiles are multiples of 32 (keeps the int8 mask block legal,
    and trivially satisfies the f32 8-sublane rule).
    """
    s_pad = _round_up(S, 8)
    d_pad = _round_up(D, 128)

    def h_bytes(tb, td_pad):
        return tb * s_pad * td_pad * 4

    if h_bytes(B, d_pad) <= block_bytes:
        return B, D                                      # whole batch per step
    tb = min(B, (block_bytes // h_bytes(1, d_pad)) // 32 * 32)
    if tb >= 32:
        return tb, D                                     # batch-tiled, full D
    # Even 32 batch rows of the full-D block overflow: split D (128-lane chunks)
    # and accumulate sim across the "arbitrary" reduction axis.
    n128 = max(1, block_bytes // h_bytes(32, 128))
    td = min(d_pad, n128 * 128)
    tb = min(B, max(32, (block_bytes // h_bytes(1, td)) // 32 * 32))
    # TODO(synk): add an S split for pathological S where even (32, S, 128) overflows.
    return tb, td


def _make_kernel(D, td, apply_softmax):
    # Last D chunk (or lane padding when td > D) reads out-of-bounds lanes of h/w:
    # mask the product so garbage (possibly NaN) never reaches the accumulator.
    need_d_mask = (D % td) != 0

    def kernel(h_ref, w_ref, mask_ref, out_ref, sim_ref):
        k = pl.program_id(1)

        @pl.when(k == 0)
        def _init():
            sim_ref[...] = jnp.zeros_like(sim_ref)

        h = h_ref[...].astype(jnp.float32)                      # (TB, S, TD)
        w = w_ref[...].astype(jnp.float32).reshape(1, 1, -1)    # (1, 1, TD)
        # Linear(D->1, no bias): fused VPU multiply + cross-lane reduce
        # (avoids a poorly-occupied N=1 MXU matmul and the squeeze relayout).
        prod = h * w
        if need_d_mask:
            lane = jax.lax.broadcasted_iota(jnp.int32, (1, 1, td), 2)
            prod = jnp.where(lane + k * td < D, prod, 0.0)
        sim_ref[...] += jnp.sum(prod, axis=-1)                  # (TB, S)

        @pl.when(k == pl.num_programs(1) - 1)
        def _finalize():
            sim = sim_ref[...]
            if not apply_softmax:
                out_ref[...] = sim.astype(out_ref.dtype)
            else:
                # allennlp masked_softmax, memory_efficient=False.
                mask = mask_ref[...].astype(jnp.float32)        # int8 {0,1} -> f32
                masked = sim * mask
                m = jnp.max(masked, axis=-1, keepdims=True)     # stable softmax
                e = jnp.exp(masked - m)
                # exact reciprocal (approx=True EUP vrcp would cost ~1e-4 rel. err.
                # and break 1e-5 parity with the reference); still a single 1/x.
                p = e * pl.reciprocal(jnp.sum(e, axis=-1, keepdims=True),
                                      approx=False)
                p = p * mask
                out = p * pl.reciprocal(
                    jnp.sum(p, axis=-1, keepdims=True) + TINY_F32, approx=False)
                out_ref[...] = out.astype(out_ref.dtype)

    return kernel


def attention_forward(h, w, mask=None, *, apply_softmax=True,
                      block_bytes=None, vmem_limit_bytes=None):
    """h: (B, S, D) float, w: (1, D) float, mask: (B, S) bool -> alpha (B, S)."""
    B, S, D = h.shape
    bb, vl = _default_budgets()
    block_bytes = block_bytes or bb
    vmem_limit_bytes = vmem_limit_bytes or vl

    if mask is None:
        mask = jnp.ones((B, S), dtype=jnp.bool_)
    # int8 mask: 1 byte/elem HBM traffic (vs 4 for a float mask); cast in-kernel.
    mask_i8 = mask.astype(jnp.int8)

    tb, td = _choose_tiles(B, S, D, block_bytes)
    nb = pl.cdiv(B, tb)
    nk = pl.cdiv(D, td)
    kernel = _make_kernel(D, td, apply_softmax)

    itemsize = jnp.dtype(h.dtype).itemsize
    return pl.pallas_call(
        kernel,
        out_shape=jax.ShapeDtypeStruct((B, S), h.dtype),
        grid=(nb, nk),
        in_specs=[
            # Streamed h tiles (double-buffered DMA; dominant HBM traffic).
            pl.BlockSpec((tb, S, td), lambda b, k: (b, 0, k)),
            # Weight chunk; tiny, re-used across batch tiles.
            pl.BlockSpec((1, td), lambda b, k: (0, k)),
            # int8 mask tile; block index independent of k -> no refetch over D.
            pl.BlockSpec((tb, S), lambda b, k: (b, 0)),
        ],
        # Same block index across k -> output tile stays resident until the last
        # D chunk writes it (accumulator pattern).  Ragged last batch tile relies
        # on Pallas masking OOB output stores; OOB rows only ever affect themselves
        # since every reduction here is per-row.
        out_specs=pl.BlockSpec((tb, S), lambda b, k: (b, 0)),
        scratch_shapes=[pltpu.VMEM((tb, S), jnp.float32)],   # sim accumulator
        compiler_params=pltpu.CompilerParams(
            dimension_semantics=("parallel", "arbitrary"),
            vmem_limit_bytes=vmem_limit_bytes,
        ),
        cost_estimate=pl.CostEstimate(
            flops=2 * B * S * D + 8 * B * S,
            transcendentals=B * S,
            bytes_accessed=B * S * D * itemsize + D * itemsize
                           + B * S + B * S * itemsize,
        ),
    )(h, w, mask_i8)


def attention_ref(h, w, mask):
    """Pure-JAX reference mirroring the PyTorch forward pass."""
    mask_f = mask.astype(jnp.float32)
    sim = jnp.einsum("bsd,od->bso", h.astype(jnp.float32),
                     w.astype(jnp.float32))[..., 0]
    p = jax.nn.softmax(sim * mask_f, axis=-1)
    p = p * mask_f
    out = p / (jnp.sum(p, axis=-1, keepdims=True) + TINY_F32)
    return out.astype(h.dtype)


if __name__ == "__main__":
    # --- primary demo: module-sized inputs -------------------------------
    B, S, D = 2, 8, 32  # batch, seq, in_features
    key = jax.random.PRNGKey(0)
    k_h, k_w, k_h2, k_w2, k_len = jax.random.split(key, 5)

    h = jax.random.normal(k_h, (B, S, D), dtype=jnp.float32)
    # Deterministic init of the Linear(in_features, 1, bias=False) weight (1, D).
    w = jax.random.normal(k_w, (1, D), dtype=jnp.float32) * 0.1
    lengths = jnp.array([6, 8], dtype=jnp.int32)
    mask = jnp.arange(S)[None, :] < lengths[:, None]  # (B, S) bool

    alpha = attention_forward(h, w, mask)
    jax.block_until_ready(alpha)
    ref = attention_ref(h, w, mask)
    assert alpha.shape == (B, S) and alpha.dtype == h.dtype
    assert jnp.allclose(alpha, ref, atol=1e-5, rtol=1e-5)

    # --- stress test: force batch tiling, D-chunked reduction, ragged edges ---
    B2, S2, D2 = 40, 8, 160
    h2 = jax.random.normal(k_h2, (B2, S2, D2), dtype=jnp.float32)
    w2 = jax.random.normal(k_w2, (1, D2), dtype=jnp.float32) * 0.1
    len2 = jax.random.randint(k_len, (B2,), 1, S2 + 1)
    mask2 = jnp.arange(S2)[None, :] < len2[:, None]
    # Tiny block budget -> tb=32 (ragged last batch tile), td=128 (2 ragged D chunks).
    alpha2 = attention_forward(h2, w2, mask2, block_bytes=140_000)
    jax.block_until_ready(alpha2)
    ref2 = attention_ref(h2, w2, mask2)
    assert jnp.allclose(alpha2, ref2, atol=1e-5, rtol=1e-5)

    print("KERNEL_OK")
</pallas_src>

<mosaic_0001>
module attributes {stable_mosaic.version = 11 : i64} {
  func.func @kernel(%arg0: i32, %arg1: i32, %arg2: memref<2x8x32xf32, #tpu.memory_space<vmem>>, %arg3: memref<1x32xf32, #tpu.memory_space<vmem>>, %arg4: memref<2x8xi8, #tpu.memory_space<vmem>>, %arg5: memref<2x8xf32, #tpu.memory_space<vmem>>, %arg6: memref<2x8xf32, #tpu.memory_space<vmem>>) attributes {dimension_semantics = [#tpu.dimension_semantics<parallel>, #tpu.dimension_semantics<arbitrary>], iteration_bounds = array<i64: 1, 1>, scalar_prefetch = 0 : i64, scratch_operands = 1 : i64, tpu.core_type = #tpu.core_type<tc>, window_params = [{transform_indices = @transform_0, window_bounds = array<i64: 2, 8, 32>}, {transform_indices = @transform_1, window_bounds = array<i64: 1, 32>}, {transform_indices = @transform_2, window_bounds = array<i64: 2, 8>}, {transform_indices = @transform_3, window_bounds = array<i64: 2, 8>}]} {
    %c0_i32 = arith.constant 0 : i32
    %0 = arith.cmpi eq, %arg1, %c0_i32 : i32
    %1 = arith.extui %0 : i1 to i32
    %c0_i32_0 = arith.constant 0 : i32
    %2 = arith.cmpi ne, %1, %c0_i32_0 : i32
    scf.if %2 {
      %cst_11 = arith.constant 0.000000e+00 : f32
      %15 = vector.broadcast %cst_11 : f32 to vector<2x8xf32>
      %c0_12 = arith.constant 0 : index
      %c0_13 = arith.constant 0 : index
      %16 = vector.load %arg6[%c0_12, %c0_13] : memref<2x8xf32, #tpu.memory_space<vmem>>, vector<2x8xf32>
      tpu.vector_store %arg6[%c0_12, %c0_13], %15 {strides = array<i32>} : memref<2x8xf32, #tpu.memory_space<vmem>>, vector<2x8xf32>,
    } else {
    }
    %c0 = arith.constant 0 : index
    %c0_1 = arith.constant 0 : index
    %c0_2 = arith.constant 0 : index
    %3 = vector.load %arg2[%c0, %c0_1, %c0_2] : memref<2x8x32xf32, #tpu.memory_space<vmem>>, vector<2x8x32xf32>
    %c0_3 = arith.constant 0 : index
    %c0_4 = arith.constant 0 : index
    %4 = vector.load %arg3[%c0_3, %c0_4] : memref<1x32xf32, #tpu.memory_space<vmem>>, vector<1x32xf32>
    %5 = vector.shape_cast %4 : vector<1x32xf32> to vector<1x1x32xf32>
    %6 = vector.broadcast %5 : vector<1x1x32xf32> to vector<2x8x32xf32>
    %7 = arith.mulf %3, %6 : vector<2x8x32xf32>
    %c0_5 = arith.constant 0 : index
    %c0_6 = arith.constant 0 : index
    %8 = vector.load %arg6[%c0_5, %c0_6] : memref<2x8xf32, #tpu.memory_space<vmem>>, vector<2x8xf32>
    %cst = arith.constant dense<0.000000e+00> : vector<2x8xf32>
    %9 = vector.multi_reduction <add>, %7, %cst [2] : vector<2x8x32xf32> to vector<2x8xf32>
    %10 = arith.addf %8, %9 : vector<2x8xf32>
    %c0_7 = arith.constant 0 : index
    %c0_8 = arith.constant 0 : index
    %11 = vector.load %arg6[%c0_7, %c0_8] : memref<2x8xf32, #tpu.memory_space<vmem>>, vector<2x8xf32>
    tpu.vector_store %arg6[%c0_7, %c0_8], %10 {strides = array<i32>} : memref<2x8xf32, #tpu.memory_space<vmem>>, vector<2x8xf32>,
    %c0_i32_9 = arith.constant 0 : i32
    %12 = arith.cmpi eq, %arg1, %c0_i32_9 : i32
    %13 = arith.extui %12 : i1 to i32
    %c0_i32_10 = arith.constant 0 : i32
    %14 = arith.cmpi ne, %13, %c0_i32_10 : i32
    scf.if %14 {
      %c0_11 = arith.constant 0 : index
      %c0_12 = arith.constant 0 : index
      %15 = vector.load %arg6[%c0_11, %c0_12] : memref<2x8xf32, #tpu.memory_space<vmem>>, vector<2x8xf32>
      %c0_13 = arith.constant 0 : index
      %c0_14 = arith.constant 0 : index
      %16 = vector.load %arg4[%c0_13, %c0_14] : memref<2x8xi8, #tpu.memory_space<vmem>>, vector<2x8xi8>
      %17 = arith.sitofp %16 : vector<2x8xi8> to vector<2x8xf32>
      %18 = arith.mulf %15, %17 : vector<2x8xf32>
      %cst_15 = arith.constant dense<0xFF800000> : vector<2xf32>
      %19 = vector.multi_reduction <maximumf>, %18, %cst_15 [1] : vector<2x8xf32> to vector<2xf32>
      %20 = vector.shape_cast %19 : vector<2xf32> to vector<2x1xf32>
      %21 = vector.broadcast %20 : vector<2x1xf32> to vector<2x8xf32>
      %22 = arith.subf %18, %21 : vector<2x8xf32>
      %23 = math.exp %22 : vector<2x8xf32>
      %cst_16 = arith.constant dense<0.000000e+00> : vector<2xf32>
      %24 = vector.multi_reduction <add>, %23, %cst_16 [1] : vector<2x8xf32> to vector<2xf32>
      %25 = vector.shape_cast %24 : vector<2xf32> to vector<2x1xf32>
      %26 = tpu.reciprocal %25 : vector<2x1xf32> -> vector<2x1xf32>
      %27 = vector.broadcast %26 : vector<2x1xf32> to vector<2x8xf32>
      %28 = arith.mulf %23, %27 : vector<2x8xf32>
      %29 = arith.mulf %28, %17 : vector<2x8xf32>
      %cst_17 = arith.constant dense<0.000000e+00> : vector<2xf32>
      %30 = vector.multi_reduction <add>, %29, %cst_17 [1] : vector<2x8xf32> to vector<2xf32>
      %31 = vector.shape_cast %30 : vector<2xf32> to vector<2x1xf32>
      %cst_18 = arith.constant 9.99999982E-14 : f32
      %32 = vector.broadcast %cst_18 : f32 to vector<2x1xf32>
      %33 = arith.addf %31, %32 : vector<2x1xf32>
      %34 = tpu.reciprocal %33 : vector<2x1xf32> -> vector<2x1xf32>
      %35 = vector.broadcast %34 : vector<2x1xf32> to vector<2x8xf32>
      %36 = arith.mulf %29, %35 : vector<2x8xf32>
      %c0_19 = arith.constant 0 : index
      %c0_20 = arith.constant 0 : index
      %37 = vector.load %arg5[%c0_19, %c0_20] : memref<2x8xf32, #tpu.memory_space<vmem>>, vector<2x8xf32>
      tpu.vector_store %arg5[%c0_19, %c0_20], %36 {strides = array<i32>} : memref<2x8xf32, #tpu.memory_space<vmem>>, vector<2x8xf32>,
    } else {
    }
    return
  }
  func.func @transform_0(%arg0: i32, %arg1: i32) -> (i32, i32, i32) {
    %c0_i32 = arith.constant 0 : i32
    %c0_i32_0 = arith.constant 0 : i32
    return %arg0, %c0_i32, %arg1 : i32, i32, i32
  }
  func.func @transform_1(%arg0: i32, %arg1: i32) -> (i32, i32) {
    %c0_i32 = arith.constant 0 : i32
    %c0_i32_0 = arith.constant 0 : i32
    return %c0_i32, %arg1 : i32, i32
  }
  func.func @transform_2(%arg0: i32, %arg1: i32) -> (i32, i32) {
    %c0_i32 = arith.constant 0 : i32
    %c0_i32_0 = arith.constant 0 : i32
    return %arg0, %c0_i32 : i32, i32
  }
  func.func @transform_3(%arg0: i32, %arg1: i32) -> (i32, i32) {
    %c0_i32 = arith.constant 0 : i32
    %c0_i32_0 = arith.constant 0 : i32
    return %arg0, %c0_i32 : i32, i32
  }
}

</mosaic_0001>

<llo_original>
// kernel: tpu_custom_call.1
$region0: #{tpu_custom_call.1}
  #allocation0 [shape = 'u32[]', space=smem, size = 0x4, offset = 0x4, fixed_abs, tag = 'smem constant byte address 0x4 - core index']
  #allocation1 [shape = 'u32[144,128]{1,0:T(1,128)}', space=vmem, size = 0x12000, scoped, tag = 'internal scratch']
  #allocation2 [shape = 'f32[2,8]{1,0:T(2,128)}', space=vmem, size = 0x400, scoped, tag = 'scratch operand']
  %s0 = inlined_call_operand.hbm [shape: f32[2,8,32], index: 0, kind: input, shape index: {}]
  %s1 = inlined_call_operand.vmem [shape: f32[1,32], index: 1, kind: input, shape index: {}]
  %s2 = inlined_call_operand.vmem [shape: s8[2,8], index: 2, kind: input, shape index: {}]
  %s3 = inlined_call_operand.hbm [shape: f32[2,8], index: 3, kind: output, shape index: {}]
  %s4 = sld [smem:[#allocation0]]
  $region34: #{tpu_custom_call.1} parent=0
    _
  %s6 = ssub.s32 1, %s4
  %s7 = scalar_select 0, %s6, %s4
  $region1: #{tpu_custom_call.1} parent=0
    #allocation3 [shape = 'u8[8192]{0}', space=vmem, size = 0x2000, scoped, tag = 'input window, operand 0, single buffered']
    #allocation4 [shape = 's32[1]{0}', space=sflag, size = 0x4, scoped, tag = 'scoped memory for tpu_custom_call.1']
    #allocation5 [shape = 's32[1]{0}', space=sflag, size = 0x4, scoped, tag = 'scoped memory for tpu_custom_call.1']
    #allocation6 [shape = 'u8[1024]{0}', space=vmem, size = 0x400, scoped, tag = 'output window, operand 0, single buffered']
    %8 = vsyncpa [#allocation4], 0
    %9 = vsyncpa [#allocation5], 0
    // Predicated region
    $region2: #{tpu_custom_call.1} parent=1 // pred_check
      _
    $region3: #{tpu_custom_call.1} parent=1 // pred_check_branch
      %11 = sbr.rel (0) target = $region5
    $region4: #{tpu_custom_call.1} parent=1 // pred_region
      %s13 = ssub.s32 256, 256
      %14 = vsyncadd [#allocation4], %s13
      %s15 = sshll.u32 [#allocation3], 4
      %s16 = int_to_ptr.vmem [resolvable:$true] %s15
      %21 = dma.hbm_to_vmem [thread:$0]  %s0, 256, %s16, [#allocation4], 128, 128, 8
    $region5: #{tpu_custom_call.1} parent=1 // pred_fallthru
      _
    // Predicated region
    $region6: #{tpu_custom_call.1} parent=1 // pred_check
      _
    $region7: #{tpu_custom_call.1} parent=1 // pred_check_branch
      %23 = sbr.rel (0) target = $region9
    $region8: #{tpu_custom_call.1} parent=1 // pred_region
      _
    $region9: #{tpu_custom_call.1} parent=1 // pred_fallthru
      _
    // Predicated region
    $region10: #{tpu_custom_call.1} parent=1 // pred_check
      _
    $region11: #{tpu_custom_call.1} parent=1 // pred_check_branch
      %25 = sbr.rel (0) target = $region13
    $region12: #{tpu_custom_call.1} parent=1 // pred_region
      _
    $region13: #{tpu_custom_call.1} parent=1 // pred_fallthru
      _
    // Predicated region
    $region14: #{tpu_custom_call.1} parent=1 // pred_check
      _
    $region15: #{tpu_custom_call.1} parent=1 // pred_check_branch
      %27 = sbr.rel (0) target = $region17
    $region16: #{tpu_custom_call.1} parent=1 // pred_region
      %28 = dma.done [#allocation4], 256
    $region17: #{tpu_custom_call.1} parent=1 // pred_fallthru
      _
    %p29 = scmp.eq.s32.totalorder 0, 0
    // Predicated region
    $region18: #{tpu_custom_call.1} parent=1 // pred_check
      %p30 = pneg %p29
    $region19: #{tpu_custom_call.1} parent=1 // pred_check_branch
      %32 = sbr.rel (%p30) target = $region21
    $region20: #{tpu_custom_call.1} parent=1 // pred_region
      %vm33 = vcmask 58368
      %34 = vst.msk [vmem:[#allocation2] sm:$0x3] %vm33, 0.0
    $region21: #{tpu_custom_call.1} parent=1 // pred_fallthru
      _
    %v35 = vld [vmem:[#allocation3] sm:$0xff]
    %v36 = vld [vmem:[#allocation3 + $0x8] sm:$0xff]
    %v37 = vld [vmem:[%s1] sm:$0x1]
    %v39 = vlaneseq
    %v40 = vshrl.u32 %v39, 7
    %v41 = vsub.s32 0, %v40
    %v42 = vrot.slane %v37, %v41
    %v44 = vmul.f32 %v35, %v42
    %v45 = vmul.f32 %v36, %v42
    %v46 = vld [vmem:[#allocation2] sm:$0x3]
    %vm47 = vcmask 261120
    %v48 = vsel %vm47, %v44, 0.0
    %49 = vadd.xlane.f32.xlu0 %v48
    %v50 = vpop.xlane.xlu0 %49
    %v51 = vsel %vm47, %v45, 0.0
    %52 = vadd.xlane.f32.xlu0 %v51
    %v53 = vpop.xlane.xlu0 %52
    %v56 = vlaneseq
    %v57 = vand.u32 %v56, 127
    %v58 = vlaneseq
    %v59 = vshrl.u32 %v58, 7
    %v60 = vsub.s32 %v57, %v59
    %v61 = vrot.slane %v50, %v60
    %v62 = vlaneseq
    %v63 = vshrl.u32 %v62, 7
    %v64 = vsub.s32 %v57, %v63
    %v65 = vrot.slane %v53, %v64
    %vm66 = vcmask 1041409
    %v67 = vsel %vm66, %v65, %v61
    %v69 = vadd.f32 %v46, %v67
    %vm70 = vcmask 58368
    %71 = vst.msk [vmem:[#allocation2] sm:$0x3] %vm70, %v69
    // Predicated region
    $region22: #{tpu_custom_call.1} parent=1 // pred_check
      %p72 = pneg %p29
    $region23: #{tpu_custom_call.1} parent=1 // pred_check_branch
      %74 = sbr.rel (%p72) target = $region25
    $region24: #{tpu_custom_call.1} parent=1 // pred_region
      %v75 = vld [vmem:[#allocation2] sm:$0x3]
      %v76 = vld [vmem:[%s2] sm:$0x1]
      %v77 = vunpack.c.0.s8 %v76
      %v78 = vcvt.s32.f32 %v77
      %v79 = vmul.f32 %v75, %v78
      %v80 = vsel %vm70, %v79, -inf
      %81 = vmax.xlane.f32.xlu0 %v80
      %v82 = vpop.xlane.xlu0 %81
      %v83 = vsub.f32 %v79, %v82
      %v84 = vmul.f32 %v83, 1.442695
      %v85 = vpow.pop %v84
      %v86 = vsel %vm70, %v85, 0.0
      %87 = vadd.xlane.f32.xlu0 %v86
      %v88 = vpop.xlane.xlu0 %87
      %v89 = vrcp.pop %v88
      %v90 = vmul.f32 %v85, %v89
      %v91 = vmul.f32 %v90, %v78
      %v92 = vsel %vm70, %v91, 0.0
      %93 = vadd.xlane.f32.xlu0 %v92
      %v94 = vpop.xlane.xlu0 %93
      %v95 = vadd.f32 %v94, 1e-13
      %v96 = vrcp.pop %v95
      %v97 = vmul.f32 %v91, %v96
      %98 = vst.msk [vmem:[#allocation6] sm:$0x3] %vm70, %v97
    $region25: #{tpu_custom_call.1} parent=1 // pred_fallthru
      _
    // Predicated region
    $region26: #{tpu_custom_call.1} parent=1 // pred_check
      _
    $region27: #{tpu_custom_call.1} parent=1 // pred_check_branch
      %100 = sbr.rel (0) target = $region29
    $region28: #{tpu_custom_call.1} parent=1 // pred_region
      %s102 = ssub.s32 32, 32
      %103 = vsyncadd [#allocation5], %s102
      %s105 = sshll.u32 [#allocation6], 4
      %s106 = int_to_ptr.vmem [resolvable:$true] %s105
      %108 = dma.vmem_to_hbm [thread:$0]  %s106, 32, %s3, [#allocation5]
    $region29: #{tpu_custom_call.1} parent=1 // pred_fallthru
      _
    // Predicated region
    $region30: #{tpu_custom_call.1} parent=1 // pred_check
      _
    $region31: #{tpu_custom_call.1} parent=1 // pred_check_branch
      %110 = sbr.rel (0) target = $region33
    $region32: #{tpu_custom_call.1} parent=1 // pred_region
      %111 = dma.done [#allocation5], 32
    $region33: #{tpu_custom_call.1} parent=1 // pred_fallthru
      _
    %112 = vsyncpa [#allocation4], 1
    %113 = vsyncpa [#allocation5], 1

</llo_original>
